<compile_context>
chip_gen: v7x
topology: tpu7x:2x2x1
jax: 0.10.0
libtpu: 0.0.40
codegen_flags: <defaults>
</compile_context>

<pallas_src>
import functools
import math

import jax
import jax.numpy as jnp
from jax.experimental import pallas as pl
from jax.experimental.pallas import tpu as pltpu


def _build_pe_table(d_model: int, max_len: int) -> jnp.ndarray:
    """Sinusoidal positional-encoding table, shape [max_len, 1, d_model] (the torch buffer)."""
    position = jnp.arange(max_len, dtype=jnp.float32)[:, None]                    # [L, 1]
    div_term = jnp.exp(jnp.arange(0, d_model, 2, dtype=jnp.float32)
                       * (-math.log(10000.0) / d_model))                          # [D/2]
    pe = jnp.zeros((max_len, d_model), dtype=jnp.float32)
    pe = pe.at[:, 0::2].set(jnp.sin(position * div_term))
    pe = pe.at[:, 1::2].set(jnp.cos(position * div_term))
    return pe[:, None, :]                                                          # [L, 1, D]


def _pe_dropout_kernel(x_ref, pe_ref, *rest, p: float):
    """x_ref: (B, tseq, D); pe_ref: (tseq, D); rest = (u_ref, o_ref) if p>0 else (o_ref,)."""
    o_ref = rest[-1]
    # broadcast-add of the positional encoding over the (leading) batch dim — cheap,
    # the (tseq, D) pe vregs are reused for every batch element.
    y = x_ref[...] + pe_ref[...][None, :, :]

    if p > 0.0:
        u_ref = rest[0]
        keep = u_ref[...] >= jnp.float32(p)                       # Bernoulli(1 - p)
        y = jnp.where(keep, y * jnp.float32(1.0 / (1.0 - p)), jnp.float32(0.0))

    o_ref[...] = y.astype(o_ref.dtype)


def _choose_tseq(S: int, B: int, D: int, itemsize: int,
                 target_bytes: int = 2 * 1024 * 1024) -> int:
    """Largest seq tile dividing S, preferably a multiple of 8, with the x tile
    (B*tseq*D*itemsize) around `target_bytes` so ~6x (3 streams, double-buffered)
    fits comfortably in scoped VMEM on every TPU generation."""
    per_row = max(1, B * D * itemsize)
    cap = max(1, target_bytes // per_row)
    if S <= cap:
        return S
    best, best_aligned = 1, None
    for t in range(1, int(cap) + 1):
        if S % t == 0:
            best = t
            if t % 8 == 0:
                best_aligned = t
    return best_aligned if best_aligned is not None else best


def positional_encoding_forward(x: jnp.ndarray,
                                pe: jnp.ndarray,
                                *,
                                p: float = 0.1,
                                rng_key=None,
                                tseq: int | None = None) -> jnp.ndarray:
    """x: [seq_len, batch, d_model];  pe: [max_len, 1, d_model] (module buffer)."""
    S, B, D = x.shape
    assert pe.shape[0] >= S and pe.shape[2] == D
    pe2d = pe[:S, 0, :].astype(jnp.float32)                       # [S, D]

    # Layout plumbing (not compute): seq -> sublane dim, d_model -> lane dim.
    x_t = jnp.transpose(x, (1, 0, 2))                             # [B, S, D]

    if tseq is None:
        tseq = _choose_tseq(S, B, D, jnp.dtype(x.dtype).itemsize)
    assert S % tseq == 0, "seq_len must be divisible by the chosen seq tile"
    grid = (S // tseq,)

    in_specs = [
        pl.BlockSpec((B, tseq, D), lambda i: (0, i, 0)),          # x tile
        pl.BlockSpec((tseq, D), lambda i: (i, 0)),                # pe tile (bcast over B)
    ]
    inputs = [x_t, pe2d]

    if p > 0.0:
        if rng_key is None:
            rng_key = jax.random.PRNGKey(0)
        u = jax.random.uniform(rng_key, (B, S, D), dtype=jnp.float32)
        in_specs.append(pl.BlockSpec((B, tseq, D), lambda i: (0, i, 0)))
        inputs.append(u)

    out_t = pl.pallas_call(
        functools.partial(_pe_dropout_kernel, p=float(p)),
        out_shape=jax.ShapeDtypeStruct((B, S, D), x.dtype),
        grid_spec=pltpu.PrefetchScalarGridSpec(
            num_scalar_prefetch=0,
            grid=grid,
            in_specs=in_specs,
            out_specs=pl.BlockSpec((B, tseq, D), lambda i: (0, i, 0)),
        ),
        compiler_params=pltpu.CompilerParams(
            dimension_semantics=("parallel",),                    # tiles independent -> megacore
            vmem_limit_bytes=32 * 1024 * 1024,                    # safe on v5e/v6e/v7x
        ),
    )(*inputs)

    return jnp.transpose(out_t, (1, 0, 2))                        # back to [S, B, D]


if __name__ == "__main__":
    # small shapes consistent with the module's forward: [seq_len, batch, d_model]
    seq_len, batch, d_model, max_len = 8, 2, 32, 64
    dropout_p = 0.1

    key = jax.random.PRNGKey(0)
    x = jax.random.normal(key, (seq_len, batch, d_model), dtype=jnp.float32)
    pe = _build_pe_table(d_model, max_len)
    ref = x + pe[:seq_len]

    # eval-mode path (p=0): kernel output must equal x + pe[:S]
    out_nodrop = positional_encoding_forward(x, pe, p=0.0)
    jax.block_until_ready(out_nodrop)
    assert out_nodrop.shape == (seq_len, batch, d_model)
    assert jnp.allclose(out_nodrop, ref, atol=1e-6, rtol=1e-6), "mismatch vs reference"

    # training-mode path: inverted dropout -> every element is 0 or (x+pe)/(1-p)
    out = positional_encoding_forward(x, pe, p=dropout_p,
                                      rng_key=jax.random.PRNGKey(1234))
    jax.block_until_ready(out)
    assert out.shape == (seq_len, batch, d_model)
    scaled = ref / (1.0 - dropout_p)
    ok = jnp.isclose(out, 0.0, atol=1e-6) | jnp.isclose(out, scaled, atol=1e-5, rtol=1e-5)
    assert bool(jnp.all(ok)), "dropout output not in {0, (x+pe)/(1-p)}"

    print("KERNEL_OK")
</pallas_src>

<mosaic_0001>
module attributes {stable_mosaic.version = 11 : i64} {
  func.func @_pe_dropout_kernel(%arg0: i32, %arg1: memref<2x8x32xf32, #tpu.memory_space<vmem>>, %arg2: memref<8x32xf32, #tpu.memory_space<vmem>>, %arg3: memref<2x8x32xf32, #tpu.memory_space<vmem>>) attributes {dimension_semantics = [#tpu.dimension_semantics<parallel>], iteration_bounds = array<i64: 1>, scalar_prefetch = 0 : i64, scratch_operands = 0 : i64, tpu.core_type = #tpu.core_type<tc>, window_params = [{transform_indices = @transform_0, window_bounds = array<i64: 2, 8, 32>}, {transform_indices = @transform_1, window_bounds = array<i64: 8, 32>}, {transform_indices = @transform_2, window_bounds = array<i64: 2, 8, 32>}]} {
    %c0 = arith.constant 0 : index
    %c0_0 = arith.constant 0 : index
    %c0_1 = arith.constant 0 : index
    %0 = vector.load %arg1[%c0, %c0_0, %c0_1] : memref<2x8x32xf32, #tpu.memory_space<vmem>>, vector<2x8x32xf32>
    %c0_2 = arith.constant 0 : index
    %c0_3 = arith.constant 0 : index
    %1 = vector.load %arg2[%c0_2, %c0_3] : memref<8x32xf32, #tpu.memory_space<vmem>>, vector<8x32xf32>
    %2 = vector.shape_cast %1 : vector<8x32xf32> to vector<1x8x32xf32>
    %3 = vector.broadcast %2 : vector<1x8x32xf32> to vector<2x8x32xf32>
    %4 = arith.addf %0, %3 : vector<2x8x32xf32>
    %c0_4 = arith.constant 0 : index
    %c0_5 = arith.constant 0 : index
    %c0_6 = arith.constant 0 : index
    %5 = vector.load %arg3[%c0_4, %c0_5, %c0_6] : memref<2x8x32xf32, #tpu.memory_space<vmem>>, vector<2x8x32xf32>
    tpu.vector_store %arg3[%c0_4, %c0_5, %c0_6], %4 {strides = array<i32>} : memref<2x8x32xf32, #tpu.memory_space<vmem>>, vector<2x8x32xf32>,
    return
  }
  func.func @transform_0(%arg0: i32) -> (i32, i32, i32) {
    %c0_i32 = arith.constant 0 : i32
    %c0_i32_0 = arith.constant 0 : i32
    %c0_i32_1 = arith.constant 0 : i32
    return %c0_i32, %arg0, %c0_i32_0 : i32, i32, i32
  }
  func.func @transform_1(%arg0: i32) -> (i32, i32) {
    %c0_i32 = arith.constant 0 : i32
    %c0_i32_0 = arith.constant 0 : i32
    return %arg0, %c0_i32 : i32, i32
  }
  func.func @transform_2(%arg0: i32) -> (i32, i32, i32) {
    %c0_i32 = arith.constant 0 : i32
    %c0_i32_0 = arith.constant 0 : i32
    %c0_i32_1 = arith.constant 0 : i32
    return %c0_i32, %arg0, %c0_i32_0 : i32, i32, i32
  }
}

</mosaic_0001>

<llo_original>
// kernel: tpu_custom_call.1
$region0: #{tpu_custom_call.1}
  #allocation0 [shape = 'u32[]', space=smem, size = 0x4, offset = 0x4, fixed_abs, tag = 'smem constant byte address 0x4 - core index']
  #allocation1 [shape = 'u32[144,128]{1,0:T(1,128)}', space=vmem, size = 0x12000, scoped, tag = 'internal scratch']
  %s0 = inlined_call_operand.hbm [shape: f32[2,8,32], index: 0, kind: input, shape index: {}]
  %s1 = inlined_call_operand.hbm [shape: f32[8,32], index: 1, kind: input, shape index: {}]
  %s2 = inlined_call_operand.hbm [shape: f32[2,8,32], index: 2, kind: output, shape index: {}]
  %s3 = sld [smem:[#allocation0]]
  $region26: #{tpu_custom_call.1} parent=0
    _
  %s5 = ssub.s32 1, %s3
  %s6 = scalar_select 0, %s5, %s3
  $region1: #{tpu_custom_call.1} parent=0
    #allocation2 [shape = 'u8[8192]{0}', space=vmem, size = 0x2000, scoped, tag = 'input window, operand 0, single buffered']
    #allocation3 [shape = 's32[1]{0}', space=sflag, size = 0x4, scoped, tag = 'scoped memory for tpu_custom_call.1']
    #allocation4 [shape = 's32[1]{0}', space=sflag, size = 0x4, scoped, tag = 'scoped memory for tpu_custom_call.1']
    #allocation5 [shape = 'u8[4096]{0}', space=vmem, size = 0x1000, scoped, tag = 'input window, operand 1, single buffered']
    #allocation6 [shape = 's32[1]{0}', space=sflag, size = 0x4, scoped, tag = 'scoped memory for tpu_custom_call.1']
    #allocation7 [shape = 'u8[8192]{0}', space=vmem, size = 0x2000, scoped, tag = 'output window, operand 0, single buffered']
    %7 = vsyncpa [#allocation3], 0
    %8 = vsyncpa [#allocation6], 0
    %9 = vsyncpa [#allocation4], 0
    // Predicated region
    $region2: #{tpu_custom_call.1} parent=1 // pred_check
      _
    $region3: #{tpu_custom_call.1} parent=1 // pred_check_branch
      %11 = sbr.rel (0) target = $region5
    $region4: #{tpu_custom_call.1} parent=1 // pred_region
      %s13 = ssub.s32 256, 256
      %14 = vsyncadd [#allocation3], %s13
      %s15 = sshll.u32 [#allocation2], 4
      %s16 = int_to_ptr.vmem [resolvable:$true] %s15
      %21 = dma.hbm_to_vmem [thread:$0]  %s0, 256, %s16, [#allocation3], 128, 128, 8
    $region5: #{tpu_custom_call.1} parent=1 // pred_fallthru
      _
    // Predicated region
    $region6: #{tpu_custom_call.1} parent=1 // pred_check
      _
    $region7: #{tpu_custom_call.1} parent=1 // pred_check_branch
      %23 = sbr.rel (0) target = $region9
    $region8: #{tpu_custom_call.1} parent=1 // pred_region
      %s25 = ssub.s32 128, 128
      %26 = vsyncadd [#allocation6], %s25
      %s28 = sshll.u32 [#allocation5], 4
      %s29 = int_to_ptr.vmem [resolvable:$true] %s28
      %31 = dma.hbm_to_vmem [thread:$0]  %s1, 128, %s29, [#allocation6]
    $region9: #{tpu_custom_call.1} parent=1 // pred_fallthru
      _
    // Predicated region
    $region10: #{tpu_custom_call.1} parent=1 // pred_check
      _
    $region11: #{tpu_custom_call.1} parent=1 // pred_check_branch
      %33 = sbr.rel (0) target = $region13
    $region12: #{tpu_custom_call.1} parent=1 // pred_region
      %34 = dma.done [#allocation3], 256
    $region13: #{tpu_custom_call.1} parent=1 // pred_fallthru
      _
    // Predicated region
    $region14: #{tpu_custom_call.1} parent=1 // pred_check
      _
    $region15: #{tpu_custom_call.1} parent=1 // pred_check_branch
      %36 = sbr.rel (0) target = $region17
    $region16: #{tpu_custom_call.1} parent=1 // pred_region
      %37 = dma.done [#allocation6], 128
    $region17: #{tpu_custom_call.1} parent=1 // pred_fallthru
      _
    %v38 = vld [vmem:[#allocation2] sm:$0xff]
    %v39 = vld [vmem:[#allocation2 + $0x8] sm:$0xff]
    %v40 = vld [vmem:[#allocation5] sm:$0xff]
    %v41 = vadd.f32 %v38, %v40
    %v42 = vadd.f32 %v39, %v40
    %vm43 = vcmask 261120
    %44 = vst.msk [vmem:[#allocation7] sm:$0xff] %vm43, %v41
    %45 = vst.msk [vmem:[#allocation7 + $0x8] sm:$0xff] %vm43, %v42
    // Predicated region
    $region18: #{tpu_custom_call.1} parent=1 // pred_check
      _
    $region19: #{tpu_custom_call.1} parent=1 // pred_check_branch
      %47 = sbr.rel (0) target = $region21
    $region20: #{tpu_custom_call.1} parent=1 // pred_region
      %s49 = ssub.s32 256, 256
      %50 = vsyncadd [#allocation4], %s49
      %s51 = sshll.u32 [#allocation7], 4
      %s52 = int_to_ptr.vmem [resolvable:$true] %s51
      %57 = dma.vmem_to_hbm [thread:$0]  %s52, 256, %s2, [#allocation4], 128, 128, 8
    $region21: #{tpu_custom_call.1} parent=1 // pred_fallthru
      _
    // Predicated region
    $region22: #{tpu_custom_call.1} parent=1 // pred_check
      _
    $region23: #{tpu_custom_call.1} parent=1 // pred_check_branch
      %59 = sbr.rel (0) target = $region25
    $region24: #{tpu_custom_call.1} parent=1 // pred_region
      %60 = dma.done [#allocation4], 256
    $region25: #{tpu_custom_call.1} parent=1 // pred_fallthru
      _
    %61 = vsyncpa [#allocation3], 1
    %62 = vsyncpa [#allocation6], 1
    %63 = vsyncpa [#allocation4], 1

</llo_original>
